<compile_context>
chip_gen: v5e
topology: v5e:2x2
jax: 0.10.0
libtpu: 0.0.40
codegen_flags: <defaults>
</compile_context>

<pallas_src>
import math

import jax
import jax.numpy as jnp
from jax import lax
from jax.experimental import pallas as pl
from jax.experimental.pallas import tpu as pltpu


def _sdpa_dropout_kernel(scale_ref, thresh_ref, keep_scale_ref,
                         q_ref, k_ref, bits_ref, v_ref, o_ref):
    # q: (B, Sq, D)  k: (B, Sk, D)  v: (B, Sk, Dv)  bits: (B, Sq, Sk)
    # Fold 1/inv_scale_factor into q before the first matmul.
    q = q_ref[...] * scale_ref[0]
    k = k_ref[...]
    v = v_ref[...]

    # scores[b] = q[b] @ k[b]^T as a batched contraction over the last dims
    # (no explicit transpose of k).
    s = lax.dot_general(
        q, k,
        dimension_numbers=(((2,), (2,)), ((0,), (0,))),
        preferred_element_type=jnp.float32)            # (B, Sq, Sk)

    # Numerically stable softmax along the last axis.
    m = jnp.max(s, axis=-1, keepdims=True)
    e = jnp.exp(s - m)
    denom = jnp.sum(e, axis=-1, keepdims=True)

    # Dropout: keep iff bits >= threshold (threshold = p * 2^32, uint32).
    # The 1/(1-p) rescale is folded into the softmax reciprocal (EUP).
    keep = bits_ref[...] >= thresh_ref[0]
    inv = pl.reciprocal(denom, approx=True) * keep_scale_ref[0]
    dropped = jnp.where(keep, e * inv, 0.0)

    # out[b] = dropped[b] @ v[b]
    o_ref[...] = lax.dot_general(
        dropped, v,
        dimension_numbers=(((2,), (1,)), ((0,), (0,))),
        preferred_element_type=jnp.float32)            # (B, Sq, Dv)


def sdpa_dropout(query, key, value, inv_scale_factor, dropout_p, seed=0):
    B, Sq, D = query.shape
    Bk, Sk, Dk = key.shape
    Dv = value.shape[-1]
    assert B == Bk and D == Dk and value.shape[1] == Sk

    query = query.astype(jnp.float32)
    key = key.astype(jnp.float32)
    value = value.astype(jnp.float32)

    # Scalar parameters -> SMEM.
    scale = jnp.asarray([1.0 / inv_scale_factor], jnp.float32)

    p = jnp.clip(jnp.asarray(dropout_p, jnp.float32), 0.0, 1.0)
    # Largest f32 strictly below 1 keeps p * 2^32 representable as uint32; for
    # p == 1 keep_scale is 0, so the output is exactly zero regardless of mask.
    p_thresh = jnp.minimum(p, jnp.float32(1.0 - 2.0 ** -24))
    thresh = (p_thresh * jnp.float32(2.0 ** 32)).astype(jnp.uint32).reshape(1)
    keep_scale = jnp.where(
        p >= 1.0, 0.0, 1.0 / jnp.maximum(1.0 - p, jnp.float32(2.0 ** -24))
    ).astype(jnp.float32).reshape(1)

    # Uniform uint32 per score element, generated outside the kernel.
    bits = jax.random.bits(jax.random.PRNGKey(seed), (B, Sq, Sk),
                           dtype=jnp.uint32)

    return pl.pallas_call(
        _sdpa_dropout_kernel,
        out_shape=jax.ShapeDtypeStruct((B, Sq, Dv), jnp.float32),
        grid=(1,),
        in_specs=[
            pl.BlockSpec(memory_space=pltpu.SMEM),            # 1/inv_scale
            pl.BlockSpec(memory_space=pltpu.SMEM),            # drop threshold (u32)
            pl.BlockSpec(memory_space=pltpu.SMEM),            # keep scale 1/(1-p)
            pl.BlockSpec((B, Sq, D), lambda i: (0, 0, 0)),    # query
            pl.BlockSpec((B, Sk, D), lambda i: (0, 0, 0)),    # key
            pl.BlockSpec((B, Sq, Sk), lambda i: (0, 0, 0)),   # dropout bits
            pl.BlockSpec((B, Sk, Dv), lambda i: (0, 0, 0)),   # value
        ],
        out_specs=pl.BlockSpec((B, Sq, Dv), lambda i: (0, 0, 0)),
        compiler_params=pltpu.CompilerParams(
            dimension_semantics=("arbitrary",)),
    )(scale, thresh, keep_scale, query, key, bits, value)


if __name__ == "__main__":
    # Shapes from the module's example tensors:
    #   query (4, 8, 16), key (4, 16, 16), value (4, 16, 64)
    B, Sq, Sk, D, Dv = 4, 8, 16, 16, 64

    root = jax.random.PRNGKey(0)
    kq, kk, kv = jax.random.split(root, 3)
    query = jax.random.normal(kq, (B, Sq, D), dtype=jnp.float32)
    key = jax.random.normal(kk, (B, Sk, D), dtype=jnp.float32)
    value = jax.random.normal(kv, (B, Sk, Dv), dtype=jnp.float32)

    inv_scale_factor = math.sqrt(D)   # divide scores by sqrt(d_k)
    dropout_p = 0.1                   # train-mode dropout probability

    out = sdpa_dropout(query, key, value, inv_scale_factor, dropout_p, seed=0)
    out = jax.block_until_ready(out)
    assert out.shape == (B, Sq, Dv)
    assert bool(jnp.all(jnp.isfinite(out)))
    print("KERNEL_OK")
</pallas_src>

<mosaic_0001>
module attributes {stable_mosaic.version = 11 : i64} {
  func.func @_sdpa_dropout_kernel(%arg0: i32, %arg1: memref<1xf32, #tpu.memory_space<smem>>, %arg2: memref<1xi32, #tpu.memory_space<smem>>, %arg3: memref<1xf32, #tpu.memory_space<smem>>, %arg4: memref<4x8x16xf32, #tpu.memory_space<vmem>>, %arg5: memref<4x16x16xf32, #tpu.memory_space<vmem>>, %arg6: memref<4x8x16xi32, #tpu.memory_space<vmem>>, %arg7: memref<4x16x64xf32, #tpu.memory_space<vmem>>, %arg8: memref<4x8x64xf32, #tpu.memory_space<vmem>>) attributes {dimension_semantics = [#tpu.dimension_semantics<arbitrary>], iteration_bounds = array<i64: 1>, scalar_prefetch = 0 : i64, scratch_operands = 0 : i64, tpu.core_type = #tpu.core_type<tc>, window_params = [{transform_indices = @transform_0, window_bounds = array<i64: 1>}, {transform_indices = @transform_1, window_bounds = array<i64: 1>}, {transform_indices = @transform_2, window_bounds = array<i64: 1>}, {pipeline_mode = #tpu.pipeline_mode<synchronous>, transform_indices = @transform_3, window_bounds = array<i64: 4, 8, 16>}, {pipeline_mode = #tpu.pipeline_mode<synchronous>, transform_indices = @transform_4, window_bounds = array<i64: 4, 16, 16>}, {pipeline_mode = #tpu.pipeline_mode<synchronous>, transform_indices = @transform_5, window_bounds = array<i64: 4, 8, 16>}, {pipeline_mode = #tpu.pipeline_mode<synchronous>, transform_indices = @transform_6, window_bounds = array<i64: 4, 16, 64>}, {pipeline_mode = #tpu.pipeline_mode<synchronous>, transform_indices = @transform_7, window_bounds = array<i64: 4, 8, 64>}]} {
    %c0 = arith.constant 0 : index
    %c0_0 = arith.constant 0 : index
    %c0_1 = arith.constant 0 : index
    %0 = vector.load %arg4[%c0, %c0_0, %c0_1] : memref<4x8x16xf32, #tpu.memory_space<vmem>>, vector<4x8x16xf32>
    %c0_2 = arith.constant 0 : index
    %1 = memref.load %arg1[%c0_2] : memref<1xf32, #tpu.memory_space<smem>>
    %2 = vector.broadcast %1 : f32 to vector<4x8x16xf32>
    %3 = arith.mulf %0, %2 : vector<4x8x16xf32>
    %c0_3 = arith.constant 0 : index
    %c0_4 = arith.constant 0 : index
    %c0_5 = arith.constant 0 : index
    %4 = vector.load %arg5[%c0_3, %c0_4, %c0_5] : memref<4x16x16xf32, #tpu.memory_space<vmem>>, vector<4x16x16xf32>
    %c0_6 = arith.constant 0 : index
    %c0_7 = arith.constant 0 : index
    %c0_8 = arith.constant 0 : index
    %5 = vector.load %arg7[%c0_6, %c0_7, %c0_8] : memref<4x16x64xf32, #tpu.memory_space<vmem>>, vector<4x16x64xf32>
    %cst = arith.constant dense<0.000000e+00> : vector<4x8x16xf32>
    %6 = tpu.matmul %3, %4, %cst {dimension_numbers = #tpu.dot_dimension_numbers<[2], [2], [1], [1], [0, 0, 0, 1, 1, 1], [0], [0]>} : vector<4x8x16xf32>, vector<4x16x16xf32>, vector<4x8x16xf32> -> vector<4x8x16xf32>
    %cst_9 = arith.constant dense<0xFF800000> : vector<4x8xf32>
    %7 = vector.multi_reduction <maximumf>, %6, %cst_9 [2] : vector<4x8x16xf32> to vector<4x8xf32>
    %8 = vector.shape_cast %7 : vector<4x8xf32> to vector<4x8x1xf32>
    %9 = vector.broadcast %8 : vector<4x8x1xf32> to vector<4x8x16xf32>
    %10 = arith.subf %6, %9 : vector<4x8x16xf32>
    %11 = math.exp %10 : vector<4x8x16xf32>
    %cst_10 = arith.constant dense<0.000000e+00> : vector<4x8xf32>
    %12 = vector.multi_reduction <add>, %11, %cst_10 [2] : vector<4x8x16xf32> to vector<4x8xf32>
    %13 = vector.shape_cast %12 : vector<4x8xf32> to vector<4x8x1xf32>
    %c0_11 = arith.constant 0 : index
    %c0_12 = arith.constant 0 : index
    %c0_13 = arith.constant 0 : index
    %14 = vector.load %arg6[%c0_11, %c0_12, %c0_13] : memref<4x8x16xi32, #tpu.memory_space<vmem>>, vector<4x8x16xi32>
    %c0_14 = arith.constant 0 : index
    %15 = memref.load %arg2[%c0_14] : memref<1xi32, #tpu.memory_space<smem>>
    %16 = vector.broadcast %15 : i32 to vector<4x8x16xi32>
    %17 = arith.cmpi uge, %14, %16 : vector<4x8x16xi32>
    %18 = tpu.reciprocal %13 {approx = true} : vector<4x8x1xf32> -> vector<4x8x1xf32>
    %c0_15 = arith.constant 0 : index
    %19 = memref.load %arg3[%c0_15] : memref<1xf32, #tpu.memory_space<smem>>
    %20 = vector.broadcast %19 : f32 to vector<4x8x1xf32>
    %21 = arith.mulf %18, %20 : vector<4x8x1xf32>
    %22 = vector.broadcast %21 : vector<4x8x1xf32> to vector<4x8x16xf32>
    %23 = arith.mulf %11, %22 : vector<4x8x16xf32>
    %cst_16 = arith.constant 0.000000e+00 : f32
    %24 = vector.broadcast %cst_16 : f32 to vector<4x8x16xf32>
    %25 = arith.select %17, %23, %24 : vector<4x8x16xi1>, vector<4x8x16xf32>
    %cst_17 = arith.constant dense<0.000000e+00> : vector<4x8x64xf32>
    %26 = tpu.matmul %25, %5, %cst_17 {dimension_numbers = #tpu.dot_dimension_numbers<[2], [1], [1], [2], [0, 0, 0, 1, 1, 2], [0], [0]>} : vector<4x8x16xf32>, vector<4x16x64xf32>, vector<4x8x64xf32> -> vector<4x8x64xf32>
    %c0_18 = arith.constant 0 : index
    %c0_19 = arith.constant 0 : index
    %c0_20 = arith.constant 0 : index
    %27 = vector.load %arg8[%c0_18, %c0_19, %c0_20] : memref<4x8x64xf32, #tpu.memory_space<vmem>>, vector<4x8x64xf32>
    tpu.vector_store %arg8[%c0_18, %c0_19, %c0_20], %26 {strides = array<i32>} : memref<4x8x64xf32, #tpu.memory_space<vmem>>, vector<4x8x64xf32>,
    return
  }
  func.func @transform_0(%arg0: i32) -> i32 {
    %c0_i32 = arith.constant 0 : i32
    %c0_i32_0 = arith.constant 0 : i32
    return %c0_i32 : i32
  }
  func.func @transform_1(%arg0: i32) -> i32 {
    %c0_i32 = arith.constant 0 : i32
    %c0_i32_0 = arith.constant 0 : i32
    return %c0_i32 : i32
  }
  func.func @transform_2(%arg0: i32) -> i32 {
    %c0_i32 = arith.constant 0 : i32
    %c0_i32_0 = arith.constant 0 : i32
    return %c0_i32 : i32
  }
  func.func @transform_3(%arg0: i32) -> (i32, i32, i32) {
    %c0_i32 = arith.constant 0 : i32
    %c0_i32_0 = arith.constant 0 : i32
    %c0_i32_1 = arith.constant 0 : i32
    %c0_i32_2 = arith.constant 0 : i32
    return %c0_i32, %c0_i32_0, %c0_i32_1 : i32, i32, i32
  }
  func.func @transform_4(%arg0: i32) -> (i32, i32, i32) {
    %c0_i32 = arith.constant 0 : i32
    %c0_i32_0 = arith.constant 0 : i32
    %c0_i32_1 = arith.constant 0 : i32
    %c0_i32_2 = arith.constant 0 : i32
    return %c0_i32, %c0_i32_0, %c0_i32_1 : i32, i32, i32
  }
  func.func @transform_5(%arg0: i32) -> (i32, i32, i32) {
    %c0_i32 = arith.constant 0 : i32
    %c0_i32_0 = arith.constant 0 : i32
    %c0_i32_1 = arith.constant 0 : i32
    %c0_i32_2 = arith.constant 0 : i32
    return %c0_i32, %c0_i32_0, %c0_i32_1 : i32, i32, i32
  }
  func.func @transform_6(%arg0: i32) -> (i32, i32, i32) {
    %c0_i32 = arith.constant 0 : i32
    %c0_i32_0 = arith.constant 0 : i32
    %c0_i32_1 = arith.constant 0 : i32
    %c0_i32_2 = arith.constant 0 : i32
    return %c0_i32, %c0_i32_0, %c0_i32_1 : i32, i32, i32
  }
  func.func @transform_7(%arg0: i32) -> (i32, i32, i32) {
    %c0_i32 = arith.constant 0 : i32
    %c0_i32_0 = arith.constant 0 : i32
    %c0_i32_1 = arith.constant 0 : i32
    %c0_i32_2 = arith.constant 0 : i32
    return %c0_i32, %c0_i32_0, %c0_i32_1 : i32, i32, i32
  }
}

</mosaic_0001>

<llo_original>
// kernel: tpu_custom_call.1
$region0: #{tpu_custom_call.1}
  #allocation0 [shape = 'u32[]', space=smem, size = 0x4, offset = 0x4, fixed_abs, tag = 'smem constant byte address 0x4 - core index']
  #allocation1 [shape = 'u32[72,128]{1,0:T(1,128)}', space=vmem, size = 0x9000, scoped, tag = 'internal scratch']
  #allocation2 [shape = 'f32[1]{0:T(128)S(6)}', space=smem, size = 0x200, scoped, tag = 'scoped memory for tpu_custom_call.1']
  #allocation3 [shape = 'u32[1]{0:T(128)S(6)}', space=smem, size = 0x200, scoped, tag = 'scoped memory for tpu_custom_call.1']
  #allocation4 [shape = 'f32[1]{0:T(128)S(6)}', space=smem, size = 0x200, scoped, tag = 'scoped memory for tpu_custom_call.1']
  %s0 = inlined_call_operand.<no memory space> [shape: f32[1], index: 0, kind: input, shape index: {}]
  %s1 = inlined_call_operand.<no memory space> [shape: u32[1], index: 1, kind: input, shape index: {}]
  %s2 = inlined_call_operand.<no memory space> [shape: f32[1], index: 2, kind: input, shape index: {}]
  %s3 = inlined_call_operand.hbm [shape: f32[4,8,16], index: 3, kind: input, shape index: {}]
  %s4 = inlined_call_operand.hbm [shape: f32[4,16,16], index: 4, kind: input, shape index: {}]
  %s5 = inlined_call_operand.hbm [shape: u32[4,8,16], index: 5, kind: input, shape index: {}]
  %s6 = inlined_call_operand.hbm [shape: f32[4,16,64], index: 6, kind: input, shape index: {}]
  %s7 = inlined_call_operand.hbm [shape: f32[4,8,64], index: 7, kind: output, shape index: {}]
  %s8 = sld [smem:[#allocation0]]
  $region54: #{tpu_custom_call.1} parent=0
    _
  %s10 = ssub.s32 1, %s8
  %s11 = scalar_select 0, %s10, %s8
  %12 = sst [smem:[#allocation2]] %s0
  %13 = sst [smem:[#allocation3]] %s1
  %14 = sst [smem:[#allocation4]] %s2
  $region1: #{tpu_custom_call.1} parent=0
    #allocation5 [shape = 'u8[16384]{0}', space=vmem, size = 0x4000, scoped, tag = 'input window, operand 3, single buffered']
    #allocation6 [shape = 's32[1]{0}', space=sflag, size = 0x4, scoped, tag = 'scoped memory for tpu_custom_call.1']
    #allocation7 [shape = 's32[1]{0}', space=sflag, size = 0x4, scoped, tag = 'scoped memory for tpu_custom_call.1']
    #allocation8 [shape = 'u8[32768]{0}', space=vmem, size = 0x8000, scoped, tag = 'input window, operand 4, single buffered']
    #allocation9 [shape = 's32[1]{0}', space=sflag, size = 0x4, scoped, tag = 'scoped memory for tpu_custom_call.1']
    #allocation10 [shape = 'u8[16384]{0}', space=vmem, size = 0x4000, scoped, tag = 'input window, operand 5, single buffered']
    #allocation11 [shape = 'u8[32768]{0}', space=vmem, size = 0x8000, scoped, tag = 'input window, operand 6, single buffered']
    #allocation12 [shape = 's32[1]{0}', space=sflag, size = 0x4, scoped, tag = 'scoped memory for tpu_custom_call.1']
    #allocation13 [shape = 'u8[16384]{0}', space=vmem, size = 0x4000, scoped, tag = 'output window, operand 0, single buffered']
    %15 = vsyncpa [#allocation6], 0
    %16 = vsyncpa [#allocation9], 0
    %17 = vsyncpa [#allocation12], 0
    %18 = vsyncpa [#allocation7], 0
    // Predicated region
    $region2: #{tpu_custom_call.1} parent=1 // pred_check
      _
    $region3: #{tpu_custom_call.1} parent=1 // pred_check_branch
      %20 = sbr.rel (0) target = $region5
    $region4: #{tpu_custom_call.1} parent=1 // pred_region
      _
    $region5: #{tpu_custom_call.1} parent=1 // pred_fallthru
      _
    // Predicated region
    $region6: #{tpu_custom_call.1} parent=1 // pred_check
      _
    $region7: #{tpu_custom_call.1} parent=1 // pred_check_branch
      %22 = sbr.rel (0) target = $region9
    $region8: #{tpu_custom_call.1} parent=1 // pred_region
      _
    $region9: #{tpu_custom_call.1} parent=1 // pred_fallthru
      _
    // Predicated region
    $region10: #{tpu_custom_call.1} parent=1 // pred_check
      _
    $region11: #{tpu_custom_call.1} parent=1 // pred_check_branch
      %24 = sbr.rel (0) target = $region13
    $region12: #{tpu_custom_call.1} parent=1 // pred_region
      _
    $region13: #{tpu_custom_call.1} parent=1 // pred_fallthru
      _
    // Predicated region
    $region14: #{tpu_custom_call.1} parent=1 // pred_check
      _
    $region15: #{tpu_custom_call.1} parent=1 // pred_check_branch
      %26 = sbr.rel (0) target = $region17
    $region16: #{tpu_custom_call.1} parent=1 // pred_region
      %28 = vsyncadd [#allocation6], 0
      %s29 = sshll.u32 %s3, 4
      %s30 = int_to_ptr.hbm [resolvable:$true] %s29
      %s31 = sshll.u32 [#allocation5], 4
      %s32 = int_to_ptr.vmem [resolvable:$true] %s31
      %37 = dma.hbm_to_vmem [thread:$0]  %s30, 512, %s32, [#allocation6], 128, 128, 8
    $region17: #{tpu_custom_call.1} parent=1 // pred_fallthru
      _
    // Predicated region
    $region18: #{tpu_custom_call.1} parent=1 // pred_check
      _
    $region19: #{tpu_custom_call.1} parent=1 // pred_check_branch
      %39 = sbr.rel (0) target = $region21
    $region20: #{tpu_custom_call.1} parent=1 // pred_region
      %41 = vsyncadd [#allocation9], 0
      %s42 = sshll.u32 %s4, 4
      %s43 = int_to_ptr.hbm [resolvable:$true] %s42
      %s44 = sshll.u32 [#allocation8], 4
      %s45 = int_to_ptr.vmem [resolvable:$true] %s44
      %50 = dma.hbm_to_vmem [thread:$0]  %s43, 1024, %s45, [#allocation9], 128, 128, 8
    $region21: #{tpu_custom_call.1} parent=1 // pred_fallthru
      _
    // Predicated region
    $region22: #{tpu_custom_call.1} parent=1 // pred_check
      _
    $region23: #{tpu_custom_call.1} parent=1 // pred_check_branch
      %52 = sbr.rel (0) target = $region25
    $region24: #{tpu_custom_call.1} parent=1 // pred_region
      %54 = vsyncadd [#allocation9], 0
      %s55 = sshll.u32 %s5, 4
      %s56 = int_to_ptr.hbm [resolvable:$true] %s55
      %s57 = sshll.u32 [#allocation10], 4
      %s58 = int_to_ptr.vmem [resolvable:$true] %s57
      %63 = dma.hbm_to_vmem [thread:$0]  %s56, 512, %s58, [#allocation9], 128, 128, 8
    $region25: #{tpu_custom_call.1} parent=1 // pred_fallthru
      _
    // Predicated region
    $region26: #{tpu_custom_call.1} parent=1 // pred_check
      _
    $region27: #{tpu_custom_call.1} parent=1 // pred_check_branch
      %65 = sbr.rel (0) target = $region29
    $region28: #{tpu_custom_call.1} parent=1 // pred_region
      %67 = vsyncadd [#allocation12], 0
      %s68 = sshll.u32 %s6, 4
      %s69 = int_to_ptr.hbm [resolvable:$true] %s68
      %s70 = sshll.u32 [#allocation11], 4
      %s71 = int_to_ptr.vmem [resolvable:$true] %s70
      %76 = dma.hbm_to_vmem [thread:$0]  %s69, 1024, %s71, [#allocation12], 128, 128, 8
    $region29: #{tpu_custom_call.1} parent=1 // pred_fallthru
      _
    // Predicated region
    $region30: #{tpu_custom_call.1} parent=1 // pred_check
      _
    $region31: #{tpu_custom_call.1} parent=1 // pred_check_branch
      %78 = sbr.rel (0) target = $region33
    $region32: #{tpu_custom_call.1} parent=1 // pred_region
      %80 = dma.done [#allocation6], 512
    $region33: #{tpu_custom_call.1} parent=1 // pred_fallthru
      _
    // Predicated region
    $region34: #{tpu_custom_call.1} parent=1 // pred_check
      _
    $region35: #{tpu_custom_call.1} parent=1 // pred_check_branch
      %82 = sbr.rel (0) target = $region37
    $region36: #{tpu_custom_call.1} parent=1 // pred_region
      %84 = dma.done [#allocation9], 1024
    $region37: #{tpu_custom_call.1} parent=1 // pred_fallthru
      _
    // Predicated region
    $region38: #{tpu_custom_call.1} parent=1 // pred_check
      _
    $region39: #{tpu_custom_call.1} parent=1 // pred_check_branch
      %86 = sbr.rel (0) target = $region41
    $region40: #{tpu_custom_call.1} parent=1 // pred_region
      %88 = dma.done [#allocation9], 512
    $region41: #{tpu_custom_call.1} parent=1 // pred_fallthru
      _
    // Predicated region
    $region42: #{tpu_custom_call.1} parent=1 // pred_check
      _
    $region43: #{tpu_custom_call.1} parent=1 // pred_check_branch
      %90 = sbr.rel (0) target = $region45
    $region44: #{tpu_custom_call.1} parent=1 // pred_region
      %92 = dma.done [#allocation12], 1024
    $region45: #{tpu_custom_call.1} parent=1 // pred_fallthru
      _
    %v93 = vld [vmem:[#allocation5] sm:$0xff]
    %v94 = vld [vmem:[#allocation5 + $0x8] sm:$0xff]
    %v95 = vld [vmem:[#allocation5 + $0x10] sm:$0xff]
    %v96 = vld [vmem:[#allocation5 + $0x18] sm:$0xff]
    %s97 = sld [smem:[#allocation2]]
    %v98 = vstv %s97
    %v99 = vmul.f32 %v93, %v98
    %v100 = vmul.f32 %v94, %v98
    %v101 = vmul.f32 %v95, %v98
    %v102 = vmul.f32 %v96, %v98
    %v103 = vld [vmem:[#allocation8] sm:$0xff]
    %v104 = vld [vmem:[#allocation8 + $0x8] sm:$0xff]
    %v105 = vld [vmem:[#allocation8 + $0x10] sm:$0xff]
    %v106 = vld [vmem:[#allocation8 + $0x18] sm:$0xff]
    %v107 = vld [vmem:[#allocation8 + $0x20] sm:$0xff]
    %v108 = vld [vmem:[#allocation8 + $0x28] sm:$0xff]
    %v109 = vld [vmem:[#allocation8 + $0x30] sm:$0xff]
    %v110 = vld [vmem:[#allocation8 + $0x38] sm:$0xff]
    %v111 = vld [vmem:[#allocation11] sm:$0xff]
    %v112 = vld [vmem:[#allocation11 + $0x8] sm:$0xff]
    %v113 = vld [vmem:[#allocation11 + $0x10] sm:$0xff]
    %v114 = vld [vmem:[#allocation11 + $0x18] sm:$0xff]
    %v115 = vld [vmem:[#allocation11 + $0x20] sm:$0xff]
    %v116 = vld [vmem:[#allocation11 + $0x28] sm:$0xff]
    %v117 = vld [vmem:[#allocation11 + $0x30] sm:$0xff]
    %v118 = vld [vmem:[#allocation11 + $0x38] sm:$0xff]
    %vm119 = vcmask 130048
    %v121 = vsel %vm119, %v99, 0
    %v124 = vsel %vm119, %v103, 0
    %v127 = vsel %vm119, %v104, 0
    %129 = vmatpush.xpose.msra.mxu0 0.0
    %130 = vmatpush.xpose.msra.mxu0 0.0
    %131 = vmatpush.xpose.msra.mxu0 0.0
    %132 = vmatpush.xpose.msra.mxu0 0.0
    %133 = vmatpush.xpose.msra.mxu0 0.0
    %134 = vmatpush.xpose.msra.mxu0 0.0
    %135 = vmatpush.xpose.msra.mxu0 0.0
    %136 = vmatpush.xpose.msra.mxu0 0.0
    %137 = vmatpush.xpose.msra.mxu0 0.0
    %138 = vmatpush.xpose.msra.mxu0 0.0
    %139 = vmatpush.xpose.msra.mxu0 0.0
    %140 = vmatpush.xpose.msra.mxu0 0.0
    %141 = vmatpush.xpose.msra.mxu0 0.0
    %142 = vmatpush.xpose.msra.mxu0 0.0
    %143 = vmatpush.xpose.msra.mxu0 %v127
    %144 = vmatpush.xpose.msra.mxu0 %v124
    %145 = vmatmul.f32.gmra.mxu0 %v121
    %v146 = vpop.f32.mrf.mxu0
    %v147 = vadd.f32 0.0, %v146
    %148 = vdwg.mxu0
    %v150 = vsel %vm119, %v100, 0
    %v153 = vsel %vm119, %v105, 0
    %v156 = vsel %vm119, %v106, 0
    %158 = vmatpush.xpose.msra.mxu0 0.0
    %159 = vmatpush.xpose.msra.mxu0 0.0
    %160 = vmatpush.xpose.msra.mxu0 0.0
    %161 = vmatpush.xpose.msra.mxu0 0.0
    %162 = vmatpush.xpose.msra.mxu0 0.0
    %163 = vmatpush.xpose.msra.mxu0 0.0
    %164 = vmatpush.xpose.msra.mxu0 0.0
    %165 = vmatpush.xpose.msra.mxu0 0.0
    %166 = vmatpush.xpose.msra.mxu0 0.0
    %167 = vmatpush.xpose.msra.mxu0 0.0
    %168 = vmatpush.xpose.msra.mxu0 0.0
    %169 = vmatpush.xpose.msra.mxu0 0.0
    %170 = vmatpush.xpose.msra.mxu0 0.0
    %171 = vmatpush.xpose.msra.mxu0 0.0
    %172 = vmatpush.xpose.msra.mxu0 %v156
    %173 = vmatpush.xpose.msra.mxu0 %v153
    %174 = vmatmul.f32.gmra.mxu0 %v150
    %v175 = vpop.f32.mrf.mxu0
    %v176 = vadd.f32 0.0, %v175
    %177 = vdwg.mxu0
    %v179 = vsel %vm119, %v101, 0
    %v182 = vsel %vm119, %v107, 0
    %v185 = vsel %vm119, %v108, 0
    %187 = vmatpush.xpose.msra.mxu0 0.0
    %188 = vmatpush.xpose.msra.mxu0 0.0
    %189 = vmatpush.xpose.msra.mxu0 0.0
    %190 = vmatpush.xpose.msra.mxu0 0.0
    %191 = vmatpush.xpose.msra.mxu0 0.0
    %192 = vmatpush.xpose.msra.mxu0 0.0
    %193 = vmatpush.xpose.msra.mxu0 0.0
    %194 = vmatpush.xpose.msra.mxu0 0.0
    %195 = vmatpush.xpose.msra.mxu0 0.0
    %196 = vmatpush.xpose.msra.mxu0 0.0
    %197 = vmatpush.xpose.msra.mxu0 0.0
    %198 = vmatpush.xpose.msra.mxu0 0.0
    %199 = vmatpush.xpose.msra.mxu0 0.0
    %200 = vmatpush.xpose.msra.mxu0 0.0
    %201 = vmatpush.xpose.msra.mxu0 %v185
    %202 = vmatpush.xpose.msra.mxu0 %v182
    %203 = vmatmul.f32.gmra.mxu0 %v179
    %v204 = vpop.f32.mrf.mxu0
    %v205 = vadd.f32 0.0, %v204
    %206 = vdwg.mxu0
    %v208 = vsel %vm119, %v102, 0
    %v211 = vsel %vm119, %v109, 0
    %v214 = vsel %vm119, %v110, 0
    %216 = vmatpush.xpose.msra.mxu0 0.0
    %217 = vmatpush.xpose.msra.mxu0 0.0
    %218 = vmatpush.xpose.msra.mxu0 0.0
    %219 = vmatpush.xpose.msra.mxu0 0.0
    %220 = vmatpush.xpose.msra.mxu0 0.0
    %221 = vmatpush.xpose.msra.mxu0 0.0
    %222 = vmatpush.xpose.msra.mxu0 0.0
    %223 = vmatpush.xpose.msra.mxu0 0.0
    %224 = vmatpush.xpose.msra.mxu0 0.0
    %225 = vmatpush.xpose.msra.mxu0 0.0
    %226 = vmatpush.xpose.msra.mxu0 0.0
    %227 = vmatpush.xpose.msra.mxu0 0.0
    %228 = vmatpush.xpose.msra.mxu0 0.0
    %229 = vmatpush.xpose.msra.mxu0 0.0
    %230 = vmatpush.xpose.msra.mxu0 %v214
    %231 = vmatpush.xpose.msra.mxu0 %v211
    %232 = vmatmul.f32.gmra.mxu0 %v208
    %v233 = vpop.f32.mrf.mxu0
    %v234 = vadd.f32 0.0, %v233
    %235 = vdwg.mxu0
    %v236 = vsel %vm119, %v147, -inf
    %237 = vmax.xlane.f32.xlu0 %v236
    %v238 = vpop.xlane.xlu0 %237
    %v239 = vsel %vm119, %v176, -inf
    %240 = vmax.xlane.f32.xlu0 %v239
    %v241 = vpop.xlane.xlu0 %240
    %v242 = vsel %vm119, %v205, -inf
    %243 = vmax.xlane.f32.xlu0 %v242
    %v244 = vpop.xlane.xlu0 %243
    %v245 = vsel %vm119, %v234, -inf
    %246 = vmax.xlane.f32.xlu0 %v245
    %v247 = vpop.xlane.xlu0 %246
    %v248 = vsub.f32 %v147, %v238
    %v249 = vsub.f32 %v176, %v241
    %v250 = vsub.f32 %v205, %v244
    %v251 = vsub.f32 %v234, %v247
    %v252 = vmul.f32 %v248, 1.442695
    %v253 = vpow.pop %v252
    %v254 = vmul.f32 %v249, 1.442695
    %v255 = vpow.pop %v254
    %v256 = vmul.f32 %v250, 1.442695
    %v257 = vpow.pop %v256
    %v258 = vmul.f32 %v251, 1.442695
    %v259 = vpow.pop %v258
    %v260 = vsel %vm119, %v253, 0.0
    %261 = vadd.xlane.f32.xlu0 %v260
    %v262 = vpop.xlane.xlu0 %261
    %v263 = vsel %vm119, %v255, 0.0
    %264 = vadd.xlane.f32.xlu0 %v263
    %v265 = vpop.xlane.xlu0 %264
    %v266 = vsel %vm119, %v257, 0.0
    %267 = vadd.xlane.f32.xlu0 %v266
    %v268 = vpop.xlane.xlu0 %267
    %v269 = vsel %vm119, %v259, 0.0
    %270 = vadd.xlane.f32.xlu0 %v269
    %v271 = vpop.xlane.xlu0 %270
    %v272 = vld [vmem:[#allocation10] sm:$0xff]
    %v273 = vld [vmem:[#allocation10 + $0x8] sm:$0xff]
    %v274 = vld [vmem:[#allocation10 + $0x10] sm:$0xff]
    %v275 = vld [vmem:[#allocation10 + $0x18] sm:$0xff]
    %s276 = sld [smem:[#allocation3]]
    %v277 = vstv %s276
    %v278 = vadd.s32 %v272, 2147483648
    %v279 = vadd.s32 %v277, 2147483648
    %vm280 = vcmp.ge.s32.totalorder %v278, %v279
    %v281 = vadd.s32 %v273, 2147483648
    %v282 = vadd.s32 %v277, 2147483648
    %vm283 = vcmp.ge.s32.totalorder %v281, %v282
    %v284 = vadd.s32 %v274, 2147483648
    %v285 = vadd.s32 %v277, 2147483648
    %vm286 = vcmp.ge.s32.totalorder %v284, %v285
    %v287 = vadd.s32 %v275, 2147483648
    %v288 = vadd.s32 %v277, 2147483648
    %vm289 = vcmp.ge.s32.totalorder %v287, %v288
    %v290 = vrcp.pop %v262
    %v291 = vrcp.pop %v265
    %v292 = vrcp.pop %v268
    %v293 = vrcp.pop %v271
    %s294 = sld [smem:[#allocation4]]
    %v295 = vstv %s294
    %v296 = vmul.f32 %v290, %v295
    %v297 = vmul.f32 %v291, %v295
    %v298 = vmul.f32 %v292, %v295
    %v299 = vmul.f32 %v293, %v295
    %v300 = vmul.f32 %v253, %v296
    %v301 = vmul.f32 %v255, %v297
    %v302 = vmul.f32 %v257, %v298
    %v303 = vmul.f32 %v259, %v299
    %v304 = vsel %vm280, %v300, 0.0
    %v305 = vsel %vm283, %v301, 0.0
    %v306 = vsel %vm286, %v302, 0.0
    %v307 = vsel %vm289, %v303, 0.0
    %v309 = vsel %vm119, %v304, 0
    %311 = vmatpush.msra.mxu0 0.0
    %312 = vmatpush.msra.mxu0 0.0
    %313 = vmatpush.msra.mxu0 0.0
    %314 = vmatpush.msra.mxu0 0.0
    %315 = vmatpush.msra.mxu0 0.0
    %316 = vmatpush.msra.mxu0 0.0
    %317 = vmatpush.msra.mxu0 0.0
    %318 = vmatpush.msra.mxu0 0.0
    %319 = vmatpush.msra.mxu0 0.0
    %320 = vmatpush.msra.mxu0 0.0
    %321 = vmatpush.msra.mxu0 0.0
    %322 = vmatpush.msra.mxu0 0.0
    %323 = vmatpush.msra.mxu0 0.0
    %324 = vmatpush.msra.mxu0 0.0
    %325 = vmatpush.msra.mxu0 %v112
    %326 = vmatpush.msra.mxu0 %v111
    %327 = vmatmul.f32.gmra.mxu0 %v309
    %v328 = vpop.f32.mrf.mxu0
    %v329 = vadd.f32 0.0, %v328
    %330 = vdwg.mxu0
    %v332 = vsel %vm119, %v305, 0
    %334 = vmatpush.msra.mxu0 0.0
    %335 = vmatpush.msra.mxu0 0.0
    %336 = vmatpush.msra.mxu0 0.0
    %337 = vmatpush.msra.mxu0 0.0
    %338 = vmatpush.msra.mxu0 0.0
    %339 = vmatpush.msra.mxu0 0.0
    %340 = vmatpush.msra.mxu0 0.0
    %341 = vmatpush.msra.mxu0 0.0
    %342 = vmatpush.msra.mxu0 0.0
    %343 = vmatpush.msra.mxu0 0.0
    %344 = vmatpush.msra.mxu0 0.0
    %345 = vmatpush.msra.mxu0 0.0
    %346 = vmatpush.msra.mxu0 0.0
    %347 = vmatpush.msra.mxu0 0.0
    %348 = vmatpush.msra.mxu0 %v114
    %349 = vmatpush.msra.mxu0 %v113
    %350 = vmatmul.f32.gmra.mxu0 %v332
    %v351 = vpop.f32.mrf.mxu0
    %v352 = vadd.f32 0.0, %v351
    %353 = vdwg.mxu0
    %v355 = vsel %vm119, %v306, 0
    %357 = vmatpush.msra.mxu0 0.0
    %358 = vmatpush.msra.mxu0 0.0
    %359 = vmatpush.msra.mxu0 0.0
    %360 = vmatpush.msra.mxu0 0.0
    %361 = vmatpush.msra.mxu0 0.0
    %362 = vmatpush.msra.mxu0 0.0
    %363 = vmatpush.msra.mxu0 0.0
    %364 = vmatpush.msra.mxu0 0.0
    %365 = vmatpush.msra.mxu0 0.0
    %366 = vmatpush.msra.mxu0 0.0
    %367 = vmatpush.msra.mxu0 0.0
    %368 = vmatpush.msra.mxu0 0.0
    %369 = vmatpush.msra.mxu0 0.0
    %370 = vmatpush.msra.mxu0 0.0
    %371 = vmatpush.msra.mxu0 %v116
    %372 = vmatpush.msra.mxu0 %v115
    %373 = vmatmul.f32.gmra.mxu0 %v355
    %v374 = vpop.f32.mrf.mxu0
    %v375 = vadd.f32 0.0, %v374
    %376 = vdwg.mxu0
    %v378 = vsel %vm119, %v307, 0
    %380 = vmatpush.msra.mxu0 0.0
    %381 = vmatpush.msra.mxu0 0.0
    %382 = vmatpush.msra.mxu0 0.0
    %383 = vmatpush.msra.mxu0 0.0
    %384 = vmatpush.msra.mxu0 0.0
    %385 = vmatpush.msra.mxu0 0.0
    %386 = vmatpush.msra.mxu0 0.0
    %387 = vmatpush.msra.mxu0 0.0
    %388 = vmatpush.msra.mxu0 0.0
    %389 = vmatpush.msra.mxu0 0.0
    %390 = vmatpush.msra.mxu0 0.0
    %391 = vmatpush.msra.mxu0 0.0
    %392 = vmatpush.msra.mxu0 0.0
    %393 = vmatpush.msra.mxu0 0.0
    %394 = vmatpush.msra.mxu0 %v118
    %395 = vmatpush.msra.mxu0 %v117
    %396 = vmatmul.f32.gmra.mxu0 %v378
    %v397 = vpop.f32.mrf.mxu0
    %v398 = vadd.f32 0.0, %v397
    %399 = vdwg.mxu0
    %vm400 = vcmask 523264
    %401 = vst.msk [vmem:[#allocation13] sm:$0xff] %vm400, %v329
    %402 = vst.msk [vmem:[#allocation13 + $0x8] sm:$0xff] %vm400, %v352
    %403 = vst.msk [vmem:[#allocation13 + $0x10] sm:$0xff] %vm400, %v375
    %404 = vst.msk [vmem:[#allocation13 + $0x18] sm:$0xff] %vm400, %v398
    // Predicated region
    $region46: #{tpu_custom_call.1} parent=1 // pred_check
      _
    $region47: #{tpu_custom_call.1} parent=1 // pred_check_branch
      %406 = sbr.rel (0) target = $region49
    $region48: #{tpu_custom_call.1} parent=1 // pred_region
      %408 = vsyncadd [#allocation7], 0
      %s409 = sshll.u32 [#allocation13], 4
      %s410 = int_to_ptr.vmem [resolvable:$true] %s409
      %s411 = sshll.u32 %s7, 4
      %s412 = int_to_ptr.hbm [resolvable:$true] %s411
      %417 = dma.vmem_to_hbm [thread:$0]  %s410, 512, %s412, [#allocation7], 128, 128, 8
    $region49: #{tpu_custom_call.1} parent=1 // pred_fallthru
      _
    // Predicated region
    $region50: #{tpu_custom_call.1} parent=1 // pred_check
      _
    $region51: #{tpu_custom_call.1} parent=1 // pred_check_branch
      %419 = sbr.rel (0) target = $region53
    $region52: #{tpu_custom_call.1} parent=1 // pred_region
      %421 = dma.done [#allocation7], 512
    $region53: #{tpu_custom_call.1} parent=1 // pred_fallthru
      _
    %422 = vsyncpa [#allocation6], 1
    %423 = vsyncpa [#allocation9], 1
    %424 = vsyncpa [#allocation12], 1
    %425 = vsyncpa [#allocation7], 1

</llo_original>
